<compile_context>
chip_gen: v5e
topology: v5e:2x2
jax: 0.10.0
libtpu: 0.0.40
codegen_flags: <defaults>
</compile_context>

<pallas_src>
import functools

import jax
import jax.numpy as jnp
from jax.experimental import pallas as pl
from jax.experimental.pallas import tpu as pltpu

_LANE = 128          # lane width (last dim)
_SUBLANE_BF16 = 16   # bf16 sublane packing (second-to-last dim granularity)


def _round_up(x, m):
    return ((x + m - 1) // m) * m


# --------------------------------------------------------------------------
# Fused kernel: one M-tile of activations through all 6 layers.
# refs = (w1, b1, w2, b2, ..., w6, b6, o_ref); weights bf16, biases f32,
# everything padded, lane-dense and VMEM-resident.
# --------------------------------------------------------------------------
def _fused_mlp_kernel(x_ref, *refs):
    o_ref = refs[-1]
    wb = refs[:-1]
    n_layers = len(wb) // 2

    h = x_ref[...]                                         # bf16 activations
    for i in range(n_layers):
        w_ref = wb[2 * i]
        b_ref = wb[2 * i + 1]
        # bf16 x bf16 MXU matmul with f32 accumulation.
        z = jnp.dot(h, w_ref[...], preferred_element_type=jnp.float32)
        z = z + b_ref[...]                                 # f32 bias add (VPU)
        if i != n_layers - 1:
            z = jnp.maximum(z, 0.0)                        # ReLU in f32
            h = z.astype(jnp.bfloat16)                     # back to bf16 for next MXU pass
        else:
            o_ref[...] = z.astype(o_ref.dtype)             # f32 logits


# --------------------------------------------------------------------------
# Parameter handling
# --------------------------------------------------------------------------
def init_linear_params(key, in_features, out_features):
    """PyTorch nn.Linear default init: U(-1/sqrt(fan_in), 1/sqrt(fan_in))."""
    kw, kb = jax.random.split(key)
    bound = 1.0 / jnp.sqrt(jnp.float32(in_features))
    w = jax.random.uniform(kw, (out_features, in_features), jnp.float32,
                           minval=-bound, maxval=bound)
    b = jax.random.uniform(kb, (out_features,), jnp.float32,
                           minval=-bound, maxval=bound)
    return w, b


def make_params(key, input_dim, l1, l2, l3, l4, l5, num_classes):
    dims = [input_dim, l1, l2, l3, l4, l5, num_classes]
    keys = jax.random.split(key, len(dims) - 1)
    return [init_linear_params(k, d_in, d_out)
            for k, d_in, d_out in zip(keys, dims[:-1], dims[1:])]


def prepare_params(params):
    """One-time prep: (N, K) PyTorch weights -> zero-padded (K_pad, N_pad)
    lane-dense bf16 layout; biases -> (1, N_pad) f32. Zero padding is exact:
    padded input columns are zero, so padded K rows contribute nothing, and
    padded output columns stay zero through bias(=0) and ReLU."""
    packed = []
    for w, b in params:
        n, k = w.shape
        k_pad = _round_up(k, _LANE)
        n_pad = _round_up(n, _LANE)
        w_p = (jnp.zeros((k_pad, n_pad), jnp.bfloat16)
               .at[:k, :n].set(w.T.astype(jnp.bfloat16)))
        b_p = jnp.zeros((1, n_pad), jnp.float32).at[0, :n].set(b)
        packed.append((w_p, b_p))
    return packed


# --------------------------------------------------------------------------
# Forward pass (jitted end-to-end)
# --------------------------------------------------------------------------
@functools.partial(jax.jit, static_argnames=("num_classes",))
def fully_connected_net_powerful(x_nchw, packed_params, num_classes):
    """x_nchw: (B, C, H, W) float32; packed_params from prepare_params().
    Returns logits of shape (B, num_classes), float32."""
    B = x_nchw.shape[0]
    x = x_nchw.reshape(B, -1)                              # nn.Flatten
    K = x.shape[1]

    k_pad = packed_params[0][0].shape[0]                   # padded input dim
    n_out_pad = packed_params[-1][0].shape[1]              # padded logits dim

    # Pad feature dim only if not already lane-aligned (1024 already is).
    if K != k_pad:
        x = jnp.pad(x, ((0, 0), (0, k_pad - K)))
    x = x.astype(jnp.bfloat16)                             # halve HBM traffic

    # ---- M tiling --------------------------------------------------------
    # tm is a multiple of 16 (bf16 sublane packing). B >= 128 gets >= 2 grid
    # steps so both v7x TensorCores are used; large batches get big tiles
    # (>= 512 rows ~ 85% of HBM roofline). No full zero-padded copy of x:
    # the overhanging last M block is masked by Pallas (its garbage rows are
    # discarded by the final [:B] slice and never reduced over in-kernel).
    if B < 128:
        tm = _round_up(max(B, _SUBLANE_BF16), _SUBLANE_BF16)
        m_in = tm
        if m_in != B:
            x = jnp.pad(x, ((0, m_in - B), (0, 0)))        # tiny pad only
    elif B < 2048:
        tm = min(_round_up(-(-B // 2), _SUBLANE_BF16), 1024)
        m_in = B
    else:
        tm = 1024
        m_in = B

    grid = (pl.cdiv(m_in, tm),)

    in_specs = [pl.BlockSpec((tm, k_pad), lambda i: (i, 0))]
    flat_wb = []
    for w_p, b_p in packed_params:
        # Same block for every M tile -> weights/biases stay resident in VMEM.
        in_specs.append(pl.BlockSpec(w_p.shape, lambda i: (0, 0)))
        in_specs.append(pl.BlockSpec(b_p.shape, lambda i: (0, 0)))
        flat_wb.append(w_p)
        flat_wb.append(b_p)

    weight_bytes = sum(w.size * w.dtype.itemsize + b.size * b.dtype.itemsize
                       for w, b in packed_params)
    flops = 2 * m_in * sum(w.shape[0] * w.shape[1] for w, _ in packed_params)
    bytes_accessed = (m_in * k_pad * 2          # bf16 input
                      + m_in * n_out_pad * 4    # f32 output
                      + weight_bytes)
    cost = pl.CostEstimate(flops=flops, transcendentals=0,
                           bytes_accessed=bytes_accessed)

    out_padded = pl.pallas_call(
        _fused_mlp_kernel,
        out_shape=jax.ShapeDtypeStruct((m_in, n_out_pad), jnp.float32),
        grid=grid,
        in_specs=in_specs,
        out_specs=pl.BlockSpec((tm, n_out_pad), lambda i: (i, 0)),
        compiler_params=pltpu.CompilerParams(
            dimension_semantics=("parallel",),
            vmem_limit_bytes=32 * 1024 * 1024),
        cost_estimate=cost,
    )(x, *flat_wb)

    return out_padded[:B, :num_classes]


# --------------------------------------------------------------------------
# Pure-JAX f32 reference (sanity check in __main__)
# --------------------------------------------------------------------------
def _reference_forward(x_nchw, params):
    B = x_nchw.shape[0]
    h = x_nchw.reshape(B, -1)
    n_layers = len(params)
    for i, (w, b) in enumerate(params):
        h = h @ w.T + b
        if i != n_layers - 1:
            h = jnp.maximum(h, 0.0)
    return h


if __name__ == "__main__":
    # Small shapes consistent with the module:
    # batch=2, channels=4, spatial=16x16 -> input_dim = 4*16*16 = 1024
    B, C, H, W = 2, 4, 16, 16
    input_dim = C * H * W
    l1 = l2 = l3 = l4 = l5 = 32
    num_classes = 10

    key = jax.random.PRNGKey(0)
    key_x, key_p = jax.random.split(key)

    x = jax.random.normal(key_x, (B, C, H, W), dtype=jnp.float32)
    params = make_params(key_p, input_dim, l1, l2, l3, l4, l5, num_classes)
    packed = prepare_params(params)      # one-time transpose + pad + bf16 cast

    out = fully_connected_net_powerful(x, packed, num_classes)
    jax.block_until_ready(out)

    assert out.shape == (B, num_classes)
    assert out.dtype == jnp.float32

    ref = _reference_forward(x, params)
    assert jnp.allclose(out, ref, rtol=2e-2, atol=2e-2), "mismatch vs reference"

    print("KERNEL_OK")
</pallas_src>

<mosaic_0001>
module attributes {stable_mosaic.version = 11 : i64} {
  func.func @_fused_mlp_kernel(%arg0: i32, %arg1: memref<16x1024xbf16, #tpu.memory_space<vmem>>, %arg2: memref<1024x128xbf16, #tpu.memory_space<vmem>>, %arg3: memref<1x128xf32, #tpu.memory_space<vmem>>, %arg4: memref<128x128xbf16, #tpu.memory_space<vmem>>, %arg5: memref<1x128xf32, #tpu.memory_space<vmem>>, %arg6: memref<128x128xbf16, #tpu.memory_space<vmem>>, %arg7: memref<1x128xf32, #tpu.memory_space<vmem>>, %arg8: memref<128x128xbf16, #tpu.memory_space<vmem>>, %arg9: memref<1x128xf32, #tpu.memory_space<vmem>>, %arg10: memref<128x128xbf16, #tpu.memory_space<vmem>>, %arg11: memref<1x128xf32, #tpu.memory_space<vmem>>, %arg12: memref<128x128xbf16, #tpu.memory_space<vmem>>, %arg13: memref<1x128xf32, #tpu.memory_space<vmem>>, %arg14: memref<16x128xf32, #tpu.memory_space<vmem>>) attributes {dimension_semantics = [#tpu.dimension_semantics<parallel>], iteration_bounds = array<i64: 1>, scalar_prefetch = 0 : i64, scratch_operands = 0 : i64, tpu.core_type = #tpu.core_type<tc>, window_params = [{transform_indices = @transform_0, window_bounds = array<i64: 16, 1024>}, {pipeline_mode = #tpu.pipeline_mode<synchronous>, transform_indices = @transform_1, window_bounds = array<i64: 1024, 128>}, {pipeline_mode = #tpu.pipeline_mode<synchronous>, transform_indices = @transform_2, window_bounds = array<i64: 1, 128>}, {pipeline_mode = #tpu.pipeline_mode<synchronous>, transform_indices = @transform_3, window_bounds = array<i64: 128, 128>}, {pipeline_mode = #tpu.pipeline_mode<synchronous>, transform_indices = @transform_4, window_bounds = array<i64: 1, 128>}, {pipeline_mode = #tpu.pipeline_mode<synchronous>, transform_indices = @transform_5, window_bounds = array<i64: 128, 128>}, {pipeline_mode = #tpu.pipeline_mode<synchronous>, transform_indices = @transform_6, window_bounds = array<i64: 1, 128>}, {pipeline_mode = #tpu.pipeline_mode<synchronous>, transform_indices = @transform_7, window_bounds = array<i64: 128, 128>}, {pipeline_mode = #tpu.pipeline_mode<synchronous>, transform_indices = @transform_8, window_bounds = array<i64: 1, 128>}, {pipeline_mode = #tpu.pipeline_mode<synchronous>, transform_indices = @transform_9, window_bounds = array<i64: 128, 128>}, {pipeline_mode = #tpu.pipeline_mode<synchronous>, transform_indices = @transform_10, window_bounds = array<i64: 1, 128>}, {pipeline_mode = #tpu.pipeline_mode<synchronous>, transform_indices = @transform_11, window_bounds = array<i64: 128, 128>}, {pipeline_mode = #tpu.pipeline_mode<synchronous>, transform_indices = @transform_12, window_bounds = array<i64: 1, 128>}, {transform_indices = @transform_13, window_bounds = array<i64: 16, 128>}]} {
    %c0 = arith.constant 0 : index
    %c0_0 = arith.constant 0 : index
    %0 = vector.load %arg1[%c0, %c0_0] : memref<16x1024xbf16, #tpu.memory_space<vmem>>, vector<16x1024xbf16>
    %c0_1 = arith.constant 0 : index
    %c0_2 = arith.constant 0 : index
    %1 = vector.load %arg2[%c0_1, %c0_2] : memref<1024x128xbf16, #tpu.memory_space<vmem>>, vector<1024x128xbf16>
    %cst = arith.constant dense<0.000000e+00> : vector<16x128xf32>
    %2 = tpu.matmul %0, %1, %cst {dimension_numbers = #tpu.dot_dimension_numbers<[1], [0], [0], [1], [0, 0, 1, 1], [], []>} : vector<16x1024xbf16>, vector<1024x128xbf16>, vector<16x128xf32> -> vector<16x128xf32>
    %c0_3 = arith.constant 0 : index
    %c0_4 = arith.constant 0 : index
    %3 = vector.load %arg3[%c0_3, %c0_4] : memref<1x128xf32, #tpu.memory_space<vmem>>, vector<1x128xf32>
    %4 = vector.broadcast %3 : vector<1x128xf32> to vector<16x128xf32>
    %5 = arith.addf %2, %4 : vector<16x128xf32>
    %cst_5 = arith.constant 0.000000e+00 : f32
    %6 = vector.broadcast %cst_5 : f32 to vector<16x128xf32>
    %7 = arith.maximumf %5, %6 : vector<16x128xf32>
    %8 = arith.truncf %7 : vector<16x128xf32> to vector<16x128xbf16>
    %c0_6 = arith.constant 0 : index
    %c0_7 = arith.constant 0 : index
    %9 = vector.load %arg4[%c0_6, %c0_7] : memref<128x128xbf16, #tpu.memory_space<vmem>>, vector<128x128xbf16>
    %cst_8 = arith.constant dense<0.000000e+00> : vector<16x128xf32>
    %10 = tpu.matmul %8, %9, %cst_8 {dimension_numbers = #tpu.dot_dimension_numbers<[1], [0], [0], [1], [0, 0, 1, 1], [], []>} : vector<16x128xbf16>, vector<128x128xbf16>, vector<16x128xf32> -> vector<16x128xf32>
    %c0_9 = arith.constant 0 : index
    %c0_10 = arith.constant 0 : index
    %11 = vector.load %arg5[%c0_9, %c0_10] : memref<1x128xf32, #tpu.memory_space<vmem>>, vector<1x128xf32>
    %12 = vector.broadcast %11 : vector<1x128xf32> to vector<16x128xf32>
    %13 = arith.addf %10, %12 : vector<16x128xf32>
    %cst_11 = arith.constant 0.000000e+00 : f32
    %14 = vector.broadcast %cst_11 : f32 to vector<16x128xf32>
    %15 = arith.maximumf %13, %14 : vector<16x128xf32>
    %16 = arith.truncf %15 : vector<16x128xf32> to vector<16x128xbf16>
    %c0_12 = arith.constant 0 : index
    %c0_13 = arith.constant 0 : index
    %17 = vector.load %arg6[%c0_12, %c0_13] : memref<128x128xbf16, #tpu.memory_space<vmem>>, vector<128x128xbf16>
    %cst_14 = arith.constant dense<0.000000e+00> : vector<16x128xf32>
    %18 = tpu.matmul %16, %17, %cst_14 {dimension_numbers = #tpu.dot_dimension_numbers<[1], [0], [0], [1], [0, 0, 1, 1], [], []>} : vector<16x128xbf16>, vector<128x128xbf16>, vector<16x128xf32> -> vector<16x128xf32>
    %c0_15 = arith.constant 0 : index
    %c0_16 = arith.constant 0 : index
    %19 = vector.load %arg7[%c0_15, %c0_16] : memref<1x128xf32, #tpu.memory_space<vmem>>, vector<1x128xf32>
    %20 = vector.broadcast %19 : vector<1x128xf32> to vector<16x128xf32>
    %21 = arith.addf %18, %20 : vector<16x128xf32>
    %cst_17 = arith.constant 0.000000e+00 : f32
    %22 = vector.broadcast %cst_17 : f32 to vector<16x128xf32>
    %23 = arith.maximumf %21, %22 : vector<16x128xf32>
    %24 = arith.truncf %23 : vector<16x128xf32> to vector<16x128xbf16>
    %c0_18 = arith.constant 0 : index
    %c0_19 = arith.constant 0 : index
    %25 = vector.load %arg8[%c0_18, %c0_19] : memref<128x128xbf16, #tpu.memory_space<vmem>>, vector<128x128xbf16>
    %cst_20 = arith.constant dense<0.000000e+00> : vector<16x128xf32>
    %26 = tpu.matmul %24, %25, %cst_20 {dimension_numbers = #tpu.dot_dimension_numbers<[1], [0], [0], [1], [0, 0, 1, 1], [], []>} : vector<16x128xbf16>, vector<128x128xbf16>, vector<16x128xf32> -> vector<16x128xf32>
    %c0_21 = arith.constant 0 : index
    %c0_22 = arith.constant 0 : index
    %27 = vector.load %arg9[%c0_21, %c0_22] : memref<1x128xf32, #tpu.memory_space<vmem>>, vector<1x128xf32>
    %28 = vector.broadcast %27 : vector<1x128xf32> to vector<16x128xf32>
    %29 = arith.addf %26, %28 : vector<16x128xf32>
    %cst_23 = arith.constant 0.000000e+00 : f32
    %30 = vector.broadcast %cst_23 : f32 to vector<16x128xf32>
    %31 = arith.maximumf %29, %30 : vector<16x128xf32>
    %32 = arith.truncf %31 : vector<16x128xf32> to vector<16x128xbf16>
    %c0_24 = arith.constant 0 : index
    %c0_25 = arith.constant 0 : index
    %33 = vector.load %arg10[%c0_24, %c0_25] : memref<128x128xbf16, #tpu.memory_space<vmem>>, vector<128x128xbf16>
    %cst_26 = arith.constant dense<0.000000e+00> : vector<16x128xf32>
    %34 = tpu.matmul %32, %33, %cst_26 {dimension_numbers = #tpu.dot_dimension_numbers<[1], [0], [0], [1], [0, 0, 1, 1], [], []>} : vector<16x128xbf16>, vector<128x128xbf16>, vector<16x128xf32> -> vector<16x128xf32>
    %c0_27 = arith.constant 0 : index
    %c0_28 = arith.constant 0 : index
    %35 = vector.load %arg11[%c0_27, %c0_28] : memref<1x128xf32, #tpu.memory_space<vmem>>, vector<1x128xf32>
    %36 = vector.broadcast %35 : vector<1x128xf32> to vector<16x128xf32>
    %37 = arith.addf %34, %36 : vector<16x128xf32>
    %cst_29 = arith.constant 0.000000e+00 : f32
    %38 = vector.broadcast %cst_29 : f32 to vector<16x128xf32>
    %39 = arith.maximumf %37, %38 : vector<16x128xf32>
    %40 = arith.truncf %39 : vector<16x128xf32> to vector<16x128xbf16>
    %c0_30 = arith.constant 0 : index
    %c0_31 = arith.constant 0 : index
    %41 = vector.load %arg12[%c0_30, %c0_31] : memref<128x128xbf16, #tpu.memory_space<vmem>>, vector<128x128xbf16>
    %cst_32 = arith.constant dense<0.000000e+00> : vector<16x128xf32>
    %42 = tpu.matmul %40, %41, %cst_32 {dimension_numbers = #tpu.dot_dimension_numbers<[1], [0], [0], [1], [0, 0, 1, 1], [], []>} : vector<16x128xbf16>, vector<128x128xbf16>, vector<16x128xf32> -> vector<16x128xf32>
    %c0_33 = arith.constant 0 : index
    %c0_34 = arith.constant 0 : index
    %43 = vector.load %arg13[%c0_33, %c0_34] : memref<1x128xf32, #tpu.memory_space<vmem>>, vector<1x128xf32>
    %44 = vector.broadcast %43 : vector<1x128xf32> to vector<16x128xf32>
    %45 = arith.addf %42, %44 : vector<16x128xf32>
    %c0_35 = arith.constant 0 : index
    %c0_36 = arith.constant 0 : index
    %46 = vector.load %arg14[%c0_35, %c0_36] : memref<16x128xf32, #tpu.memory_space<vmem>>, vector<16x128xf32>
    tpu.vector_store %arg14[%c0_35, %c0_36], %45 {strides = array<i32>} : memref<16x128xf32, #tpu.memory_space<vmem>>, vector<16x128xf32>,
    return
  }
  func.func @transform_0(%arg0: i32) -> (i32, i32) {
    %c0_i32 = arith.constant 0 : i32
    %c0_i32_0 = arith.constant 0 : i32
    return %arg0, %c0_i32 : i32, i32
  }
  func.func @transform_1(%arg0: i32) -> (i32, i32) {
    %c0_i32 = arith.constant 0 : i32
    %c0_i32_0 = arith.constant 0 : i32
    %c0_i32_1 = arith.constant 0 : i32
    return %c0_i32, %c0_i32_0 : i32, i32
  }
  func.func @transform_2(%arg0: i32) -> (i32, i32) {
    %c0_i32 = arith.constant 0 : i32
    %c0_i32_0 = arith.constant 0 : i32
    %c0_i32_1 = arith.constant 0 : i32
    return %c0_i32, %c0_i32_0 : i32, i32
  }
  func.func @transform_3(%arg0: i32) -> (i32, i32) {
    %c0_i32 = arith.constant 0 : i32
    %c0_i32_0 = arith.constant 0 : i32
    %c0_i32_1 = arith.constant 0 : i32
    return %c0_i32, %c0_i32_0 : i32, i32
  }
  func.func @transform_4(%arg0: i32) -> (i32, i32) {
    %c0_i32 = arith.constant 0 : i32
    %c0_i32_0 = arith.constant 0 : i32
    %c0_i32_1 = arith.constant 0 : i32
    return %c0_i32, %c0_i32_0 : i32, i32
  }
  func.func @transform_5(%arg0: i32) -> (i32, i32) {
    %c0_i32 = arith.constant 0 : i32
    %c0_i32_0 = arith.constant 0 : i32
    %c0_i32_1 = arith.constant 0 : i32
    return %c0_i32, %c0_i32_0 : i32, i32
  }
  func.func @transform_6(%arg0: i32) -> (i32, i32) {
    %c0_i32 = arith.constant 0 : i32
    %c0_i32_0 = arith.constant 0 : i32
    %c0_i32_1 = arith.constant 0 : i32
    return %c0_i32, %c0_i32_0 : i32, i32
  }
  func.func @transform_7(%arg0: i32) -> (i32, i32) {
    %c0_i32 = arith.constant 0 : i32
    %c0_i32_0 = arith.constant 0 : i32
    %c0_i32_1 = arith.constant 0 : i32
    return %c0_i32, %c0_i32_0 : i32, i32
  }
  func.func @transform_8(%arg0: i32) -> (i32, i32) {
    %c0_i32 = arith.constant 0 : i32
    %c0_i32_0 = arith.constant 0 : i32
    %c0_i32_1 = arith.constant 0 : i32
    return %c0_i32, %c0_i32_0 : i32, i32
  }
  func.func @transform_9(%arg0: i32) -> (i32, i32) {
    %c0_i32 = arith.constant 0 : i32
    %c0_i32_0 = arith.constant 0 : i32
    %c0_i32_1 = arith.constant 0 : i32
    return %c0_i32, %c0_i32_0 : i32, i32
  }
  func.func @transform_10(%arg0: i32) -> (i32, i32) {
    %c0_i32 = arith.constant 0 : i32
    %c0_i32_0 = arith.constant 0 : i32
    %c0_i32_1 = arith.constant 0 : i32
    return %c0_i32, %c0_i32_0 : i32, i32
  }
  func.func @transform_11(%arg0: i32) -> (i32, i32) {
    %c0_i32 = arith.constant 0 : i32
    %c0_i32_0 = arith.constant 0 : i32
    %c0_i32_1 = arith.constant 0 : i32
    return %c0_i32, %c0_i32_0 : i32, i32
  }
  func.func @transform_12(%arg0: i32) -> (i32, i32) {
    %c0_i32 = arith.constant 0 : i32
    %c0_i32_0 = arith.constant 0 : i32
    %c0_i32_1 = arith.constant 0 : i32
    return %c0_i32, %c0_i32_0 : i32, i32
  }
  func.func @transform_13(%arg0: i32) -> (i32, i32) {
    %c0_i32 = arith.constant 0 : i32
    %c0_i32_0 = arith.constant 0 : i32
    return %arg0, %c0_i32 : i32, i32
  }
}

</mosaic_0001>

<llo_original>
// kernel: fully_connected_net_powerful.1
$region0: #{fully_connected_net_powerful.1}
  #allocation0 [shape = 'u32[]', space=smem, size = 0x4, offset = 0x4, fixed_abs, tag = 'smem constant byte address 0x4 - core index']
  #allocation1 [shape = 'u32[72,128]{1,0:T(1,128)}', space=vmem, size = 0x9000, scoped, tag = 'internal scratch']
  %s0 = inlined_call_operand.vmem [shape: bf16[16,1024], index: 0, kind: input, shape index: {}]
  %s1 = inlined_call_operand.hbm [shape: bf16[1024,128], index: 1, kind: input, shape index: {}]
  %s2 = inlined_call_operand.vmem [shape: f32[1,128], index: 2, kind: input, shape index: {}]
  %s3 = inlined_call_operand.vmem [shape: bf16[128,128], index: 3, kind: input, shape index: {}]
  %s4 = inlined_call_operand.vmem [shape: f32[1,128], index: 4, kind: input, shape index: {}]
  %s5 = inlined_call_operand.vmem [shape: bf16[128,128], index: 5, kind: input, shape index: {}]
  %s6 = inlined_call_operand.vmem [shape: f32[1,128], index: 6, kind: input, shape index: {}]
  %s7 = inlined_call_operand.vmem [shape: bf16[128,128], index: 7, kind: input, shape index: {}]
  %s8 = inlined_call_operand.vmem [shape: f32[1,128], index: 8, kind: input, shape index: {}]
  %s9 = inlined_call_operand.vmem [shape: bf16[128,128], index: 9, kind: input, shape index: {}]
  %s10 = inlined_call_operand.vmem [shape: f32[1,128], index: 10, kind: input, shape index: {}]
  %s11 = inlined_call_operand.vmem [shape: bf16[128,128], index: 11, kind: input, shape index: {}]
  %s12 = inlined_call_operand.vmem [shape: f32[1,128], index: 12, kind: input, shape index: {}]
  %s13 = inlined_call_operand.vmem [shape: f32[16,128], index: 13, kind: output, shape index: {}]
  %s14 = sld [smem:[#allocation0]]
  $region66: #{fully_connected_net_powerful.1} parent=0
    _
  %s16 = ssub.s32 1, %s14
  %s17 = scalar_select 0, %s16, %s14
  $region1: #{fully_connected_net_powerful.1} parent=0
    #allocation2 [shape = 'u8[262144]{0}', space=vmem, size = 0x40000, scoped, tag = 'input window, operand 1, single buffered']
    #allocation3 [shape = 's32[1]{0}', space=sflag, size = 0x4, scoped, tag = 'scoped memory for fully_connected_net_powerful.1']
    %18 = vsyncpa [#allocation3], 0
    // Predicated region
    $region2: #{fully_connected_net_powerful.1} parent=1 // pred_check
      _
    $region3: #{fully_connected_net_powerful.1} parent=1 // pred_check_branch
      %20 = sbr.rel (0) target = $region5
    $region4: #{fully_connected_net_powerful.1} parent=1 // pred_region
      _
    $region5: #{fully_connected_net_powerful.1} parent=1 // pred_fallthru
      _
    // Predicated region
    $region6: #{fully_connected_net_powerful.1} parent=1 // pred_check
      _
    $region7: #{fully_connected_net_powerful.1} parent=1 // pred_check_branch
      %22 = sbr.rel (0) target = $region9
    $region8: #{fully_connected_net_powerful.1} parent=1 // pred_region
      %24 = vsyncadd [#allocation3], 0
      %s25 = sshll.u32 %s1, 4
      %s26 = int_to_ptr.hbm [resolvable:$true] %s25
      %s27 = sshll.u32 [#allocation2], 4
      %s28 = int_to_ptr.vmem [resolvable:$true] %s27
      %33 = dma.hbm_to_vmem [thread:$0]  %s26, 8192, %s28, [#allocation3], 64, 64, 4
    $region9: #{fully_connected_net_powerful.1} parent=1 // pred_fallthru
      _
    // Predicated region
    $region10: #{fully_connected_net_powerful.1} parent=1 // pred_check
      _
    $region11: #{fully_connected_net_powerful.1} parent=1 // pred_check_branch
      %35 = sbr.rel (0) target = $region13
    $region12: #{fully_connected_net_powerful.1} parent=1 // pred_region
      _
    $region13: #{fully_connected_net_powerful.1} parent=1 // pred_fallthru
      _
    // Predicated region
    $region14: #{fully_connected_net_powerful.1} parent=1 // pred_check
      _
    $region15: #{fully_connected_net_powerful.1} parent=1 // pred_check_branch
      %37 = sbr.rel (0) target = $region17
    $region16: #{fully_connected_net_powerful.1} parent=1 // pred_region
      _
    $region17: #{fully_connected_net_powerful.1} parent=1 // pred_fallthru
      _
    // Predicated region
    $region18: #{fully_connected_net_powerful.1} parent=1 // pred_check
      _
    $region19: #{fully_connected_net_powerful.1} parent=1 // pred_check_branch
      %39 = sbr.rel (0) target = $region21
    $region20: #{fully_connected_net_powerful.1} parent=1 // pred_region
      _
    $region21: #{fully_connected_net_powerful.1} parent=1 // pred_fallthru
      _
    // Predicated region
    $region22: #{fully_connected_net_powerful.1} parent=1 // pred_check
      _
    $region23: #{fully_connected_net_powerful.1} parent=1 // pred_check_branch
      %41 = sbr.rel (0) target = $region25
    $region24: #{fully_connected_net_powerful.1} parent=1 // pred_region
      _
    $region25: #{fully_connected_net_powerful.1} parent=1 // pred_fallthru
      _
    // Predicated region
    $region26: #{fully_connected_net_powerful.1} parent=1 // pred_check
      _
    $region27: #{fully_connected_net_powerful.1} parent=1 // pred_check_branch
      %43 = sbr.rel (0) target = $region29
    $region28: #{fully_connected_net_powerful.1} parent=1 // pred_region
      _
    $region29: #{fully_connected_net_powerful.1} parent=1 // pred_fallthru
      _
    // Predicated region
    $region30: #{fully_connected_net_powerful.1} parent=1 // pred_check
      _
    $region31: #{fully_connected_net_powerful.1} parent=1 // pred_check_branch
      %45 = sbr.rel (0) target = $region33
    $region32: #{fully_connected_net_powerful.1} parent=1 // pred_region
      _
    $region33: #{fully_connected_net_powerful.1} parent=1 // pred_fallthru
      _
    // Predicated region
    $region34: #{fully_connected_net_powerful.1} parent=1 // pred_check
      _
    $region35: #{fully_connected_net_powerful.1} parent=1 // pred_check_branch
      %47 = sbr.rel (0) target = $region37
    $region36: #{fully_connected_net_powerful.1} parent=1 // pred_region
      _
    $region37: #{fully_connected_net_powerful.1} parent=1 // pred_fallthru
      _
    // Predicated region
    $region38: #{fully_connected_net_powerful.1} parent=1 // pred_check
      _
    $region39: #{fully_connected_net_powerful.1} parent=1 // pred_check_branch
      %49 = sbr.rel (0) target = $region41
    $region40: #{fully_connected_net_powerful.1} parent=1 // pred_region
      _
    $region41: #{fully_connected_net_powerful.1} parent=1 // pred_fallthru
      _
    // Predicated region
    $region42: #{fully_connected_net_powerful.1} parent=1 // pred_check
      _
    $region43: #{fully_connected_net_powerful.1} parent=1 // pred_check_branch
      %51 = sbr.rel (0) target = $region45
    $region44: #{fully_connected_net_powerful.1} parent=1 // pred_region
      _
    $region45: #{fully_connected_net_powerful.1} parent=1 // pred_fallthru
      _
    // Predicated region
    $region46: #{fully_connected_net_powerful.1} parent=1 // pred_check
      _
    $region47: #{fully_connected_net_powerful.1} parent=1 // pred_check_branch
      %53 = sbr.rel (0) target = $region49
    $region48: #{fully_connected_net_powerful.1} parent=1 // pred_region
      _
    $region49: #{fully_connected_net_powerful.1} parent=1 // pred_fallthru
      _
    // Predicated region
    $region50: #{fully_connected_net_powerful.1} parent=1 // pred_check
      _
    $region51: #{fully_connected_net_powerful.1} parent=1 // pred_check_branch
      %55 = sbr.rel (0) target = $region53
    $region52: #{fully_connected_net_powerful.1} parent=1 // pred_region
      _
    $region53: #{fully_connected_net_powerful.1} parent=1 // pred_fallthru
      _
    // Predicated region
    $region54: #{fully_connected_net_powerful.1} parent=1 // pred_check
      _
    $region55: #{fully_connected_net_powerful.1} parent=1 // pred_check_branch
      %57 = sbr.rel (0) target = $region57
    $region56: #{fully_connected_net_powerful.1} parent=1 // pred_region
      %59 = dma.done [#allocation3], 8192
    $region57: #{fully_connected_net_powerful.1} parent=1 // pred_fallthru
      _
    %v60 = vld [vmem:[%s0] sm:$0xff]
    %v61 = vld [vmem:[%s0 + $0x8] sm:$0xff]
    %v62 = vld [vmem:[%s0 + $0x10] sm:$0xff]
    %v63 = vld [vmem:[%s0 + $0x18] sm:$0xff]
    %v64 = vld [vmem:[%s0 + $0x20] sm:$0xff]
    %v65 = vld [vmem:[%s0 + $0x28] sm:$0xff]
    %v66 = vld [vmem:[%s0 + $0x30] sm:$0xff]
    %v67 = vld [vmem:[%s0 + $0x38] sm:$0xff]
    %v68 = vld [vmem:[#allocation2] sm:$0xf]
    %v69 = vld [vmem:[#allocation2 + $0x4] sm:$0xf]
    %v70 = vld [vmem:[#allocation2 + $0x8] sm:$0xf]
    %v71 = vld [vmem:[#allocation2 + $0xc] sm:$0xf]
    %v72 = vld [vmem:[#allocation2 + $0x10] sm:$0xf]
    %v73 = vld [vmem:[#allocation2 + $0x14] sm:$0xf]
    %v74 = vld [vmem:[#allocation2 + $0x18] sm:$0xf]
    %v75 = vld [vmem:[#allocation2 + $0x1c] sm:$0xf]
    %v76 = vld [vmem:[#allocation2 + $0x20] sm:$0xf]
    %v77 = vld [vmem:[#allocation2 + $0x24] sm:$0xf]
    %v78 = vld [vmem:[#allocation2 + $0x28] sm:$0xf]
    %v79 = vld [vmem:[#allocation2 + $0x2c] sm:$0xf]
    %v80 = vld [vmem:[#allocation2 + $0x30] sm:$0xf]
    %v81 = vld [vmem:[#allocation2 + $0x34] sm:$0xf]
    %v82 = vld [vmem:[#allocation2 + $0x38] sm:$0xf]
    %v83 = vld [vmem:[#allocation2 + $0x3c] sm:$0xf]
    %v84 = vld [vmem:[#allocation2 + $0x40] sm:$0xf]
    %v85 = vld [vmem:[#allocation2 + $0x44] sm:$0xf]
    %v86 = vld [vmem:[#allocation2 + $0x48] sm:$0xf]
    %v87 = vld [vmem:[#allocation2 + $0x4c] sm:$0xf]
    %v88 = vld [vmem:[#allocation2 + $0x50] sm:$0xf]
    %v89 = vld [vmem:[#allocation2 + $0x54] sm:$0xf]
    %v90 = vld [vmem:[#allocation2 + $0x58] sm:$0xf]
    %v91 = vld [vmem:[#allocation2 + $0x5c] sm:$0xf]
    %v92 = vld [vmem:[#allocation2 + $0x60] sm:$0xf]
    %v93 = vld [vmem:[#allocation2 + $0x64] sm:$0xf]
    %v94 = vld [vmem:[#allocation2 + $0x68] sm:$0xf]
    %v95 = vld [vmem:[#allocation2 + $0x6c] sm:$0xf]
    %v96 = vld [vmem:[#allocation2 + $0x70] sm:$0xf]
    %v97 = vld [vmem:[#allocation2 + $0x74] sm:$0xf]
    %v98 = vld [vmem:[#allocation2 + $0x78] sm:$0xf]
    %v99 = vld [vmem:[#allocation2 + $0x7c] sm:$0xf]
    %v100 = vld [vmem:[#allocation2 + $0x80] sm:$0xf]
    %v101 = vld [vmem:[#allocation2 + $0x84] sm:$0xf]
    %v102 = vld [vmem:[#allocation2 + $0x88] sm:$0xf]
    %v103 = vld [vmem:[#allocation2 + $0x8c] sm:$0xf]
    %v104 = vld [vmem:[#allocation2 + $0x90] sm:$0xf]
    %v105 = vld [vmem:[#allocation2 + $0x94] sm:$0xf]
    %v106 = vld [vmem:[#allocation2 + $0x98] sm:$0xf]
    %v107 = vld [vmem:[#allocation2 + $0x9c] sm:$0xf]
    %v108 = vld [vmem:[#allocation2 + $0xa0] sm:$0xf]
    %v109 = vld [vmem:[#allocation2 + $0xa4] sm:$0xf]
    %v110 = vld [vmem:[#allocation2 + $0xa8] sm:$0xf]
    %v111 = vld [vmem:[#allocation2 + $0xac] sm:$0xf]
    %v112 = vld [vmem:[#allocation2 + $0xb0] sm:$0xf]
    %v113 = vld [vmem:[#allocation2 + $0xb4] sm:$0xf]
    %v114 = vld [vmem:[#allocation2 + $0xb8] sm:$0xf]
    %v115 = vld [vmem:[#allocation2 + $0xbc] sm:$0xf]
    %v116 = vld [vmem:[#allocation2 + $0xc0] sm:$0xf]
    %v117 = vld [vmem:[#allocation2 + $0xc4] sm:$0xf]
    %v118 = vld [vmem:[#allocation2 + $0xc8] sm:$0xf]
    %v119 = vld [vmem:[#allocation2 + $0xcc] sm:$0xf]
    %v120 = vld [vmem:[#allocation2 + $0xd0] sm:$0xf]
    %v121 = vld [vmem:[#allocation2 + $0xd4] sm:$0xf]
    %v122 = vld [vmem:[#allocation2 + $0xd8] sm:$0xf]
    %v123 = vld [vmem:[#allocation2 + $0xdc] sm:$0xf]
    %v124 = vld [vmem:[#allocation2 + $0xe0] sm:$0xf]
    %v125 = vld [vmem:[#allocation2 + $0xe4] sm:$0xf]
    %v126 = vld [vmem:[#allocation2 + $0xe8] sm:$0xf]
    %v127 = vld [vmem:[#allocation2 + $0xec] sm:$0xf]
    %v128 = vld [vmem:[#allocation2 + $0xf0] sm:$0xf]
    %v129 = vld [vmem:[#allocation2 + $0xf4] sm:$0xf]
    %v130 = vld [vmem:[#allocation2 + $0xf8] sm:$0xf]
    %v131 = vld [vmem:[#allocation2 + $0xfc] sm:$0xf]
    %v132 = vld [vmem:[#allocation2 + $0x100] sm:$0xf]
    %v133 = vld [vmem:[#allocation2 + $0x104] sm:$0xf]
    %v134 = vld [vmem:[#allocation2 + $0x108] sm:$0xf]
    %v135 = vld [vmem:[#allocation2 + $0x10c] sm:$0xf]
    %v136 = vld [vmem:[#allocation2 + $0x110] sm:$0xf]
    %v137 = vld [vmem:[#allocation2 + $0x114] sm:$0xf]
    %v138 = vld [vmem:[#allocation2 + $0x118] sm:$0xf]
    %v139 = vld [vmem:[#allocation2 + $0x11c] sm:$0xf]
    %v140 = vld [vmem:[#allocation2 + $0x120] sm:$0xf]
    %v141 = vld [vmem:[#allocation2 + $0x124] sm:$0xf]
    %v142 = vld [vmem:[#allocation2 + $0x128] sm:$0xf]
    %v143 = vld [vmem:[#allocation2 + $0x12c] sm:$0xf]
    %v144 = vld [vmem:[#allocation2 + $0x130] sm:$0xf]
    %v145 = vld [vmem:[#allocation2 + $0x134] sm:$0xf]
    %v146 = vld [vmem:[#allocation2 + $0x138] sm:$0xf]
    %v147 = vld [vmem:[#allocation2 + $0x13c] sm:$0xf]
    %v148 = vld [vmem:[#allocation2 + $0x140] sm:$0xf]
    %v149 = vld [vmem:[#allocation2 + $0x144] sm:$0xf]
    %v150 = vld [vmem:[#allocation2 + $0x148] sm:$0xf]
    %v151 = vld [vmem:[#allocation2 + $0x14c] sm:$0xf]
    %v152 = vld [vmem:[#allocation2 + $0x150] sm:$0xf]
    %v153 = vld [vmem:[#allocation2 + $0x154] sm:$0xf]
    %v154 = vld [vmem:[#allocation2 + $0x158] sm:$0xf]
    %v155 = vld [vmem:[#allocation2 + $0x15c] sm:$0xf]
    %v156 = vld [vmem:[#allocation2 + $0x160] sm:$0xf]
    %v157 = vld [vmem:[#allocation2 + $0x164] sm:$0xf]
    %v158 = vld [vmem:[#allocation2 + $0x168] sm:$0xf]
    %v159 = vld [vmem:[#allocation2 + $0x16c] sm:$0xf]
    %v160 = vld [vmem:[#allocation2 + $0x170] sm:$0xf]
    %v161 = vld [vmem:[#allocation2 + $0x174] sm:$0xf]
    %v162 = vld [vmem:[#allocation2 + $0x178] sm:$0xf]
    %v163 = vld [vmem:[#allocation2 + $0x17c] sm:$0xf]
    %v164 = vld [vmem:[#allocation2 + $0x180] sm:$0xf]
    %v165 = vld [vmem:[#allocation2 + $0x184] sm:$0xf]
    %v166 = vld [vmem:[#allocation2 + $0x188] sm:$0xf]
    %v167 = vld [vmem:[#allocation2 + $0x18c] sm:$0xf]
    %v168 = vld [vmem:[#allocation2 + $0x190] sm:$0xf]
    %v169 = vld [vmem:[#allocation2 + $0x194] sm:$0xf]
    %v170 = vld [vmem:[#allocation2 + $0x198] sm:$0xf]
    %v171 = vld [vmem:[#allocation2 + $0x19c] sm:$0xf]
    %v172 = vld [vmem:[#allocation2 + $0x1a0] sm:$0xf]
    %v173 = vld [vmem:[#allocation2 + $0x1a4] sm:$0xf]
    %v174 = vld [vmem:[#allocation2 + $0x1a8] sm:$0xf]
    %v175 = vld [vmem:[#allocation2 + $0x1ac] sm:$0xf]
    %v176 = vld [vmem:[#allocation2 + $0x1b0] sm:$0xf]
    %v177 = vld [vmem:[#allocation2 + $0x1b4] sm:$0xf]
    %v178 = vld [vmem:[#allocation2 + $0x1b8] sm:$0xf]
    %v179 = vld [vmem:[#allocation2 + $0x1bc] sm:$0xf]
    %v180 = vld [vmem:[#allocation2 + $0x1c0] sm:$0xf]
    %v181 = vld [vmem:[#allocation2 + $0x1c4] sm:$0xf]
    %v182 = vld [vmem:[#allocation2 + $0x1c8] sm:$0xf]
    %v183 = vld [vmem:[#allocation2 + $0x1cc] sm:$0xf]
    %v184 = vld [vmem:[#allocation2 + $0x1d0] sm:$0xf]
    %v185 = vld [vmem:[#allocation2 + $0x1d4] sm:$0xf]
    %v186 = vld [vmem:[#allocation2 + $0x1d8] sm:$0xf]
    %v187 = vld [vmem:[#allocation2 + $0x1dc] sm:$0xf]
    %v188 = vld [vmem:[#allocation2 + $0x1e0] sm:$0xf]
    %v189 = vld [vmem:[#allocation2 + $0x1e4] sm:$0xf]
    %v190 = vld [vmem:[#allocation2 + $0x1e8] sm:$0xf]
    %v191 = vld [vmem:[#allocation2 + $0x1ec] sm:$0xf]
    %v192 = vld [vmem:[#allocation2 + $0x1f0] sm:$0xf]
    %v193 = vld [vmem:[#allocation2 + $0x1f4] sm:$0xf]
    %v194 = vld [vmem:[#allocation2 + $0x1f8] sm:$0xf]
    %v195 = vld [vmem:[#allocation2 + $0x1fc] sm:$0xf]
    %v196 = vld [vmem:[%s2] sm:$0x1]
    %v198 = vperm.slane %v196, 0
    %v208 = vunpack.c.l.b16 %v60
    %v209 = vunpack.c.h.b16 %v60
    %v210 = vunpack.c.l.b16 %v61
    %v211 = vunpack.c.h.b16 %v61
    %v212 = vunpack.c.l.b16 %v62
    %v213 = vunpack.c.h.b16 %v62
    %v214 = vunpack.c.l.b16 %v63
    %v215 = vunpack.c.h.b16 %v63
    %v216 = vunpack.c.l.b16 %v64
    %v217 = vunpack.c.h.b16 %v64
    %v218 = vunpack.c.l.b16 %v65
    %v219 = vunpack.c.h.b16 %v65
    %v220 = vunpack.c.l.b16 %v66
    %v221 = vunpack.c.h.b16 %v66
    %v222 = vunpack.c.l.b16 %v67
    %v223 = vunpack.c.h.b16 %v67
    %v224 = vpack.c.b16 %v216, %v208
    %v225 = vpack.c.b16 %v217, %v209
    %v226 = vpack.c.b16 %v218, %v210
    %v227 = vpack.c.b16 %v219, %v211
    %v228 = vpack.c.b16 %v220, %v212
    %v229 = vpack.c.b16 %v221, %v213
    %v230 = vpack.c.b16 %v222, %v214
    %v231 = vpack.c.b16 %v223, %v215
    %v368 = vunpack.c.l.b16 %v68
    %v369 = vunpack.c.l.b16 %v69
    %v370 = vunpack.c.l.b16 %v70
    %v371 = vunpack.c.l.b16 %v71
    %v372 = vunpack.c.l.b16 %v72
    %v373 = vunpack.c.l.b16 %v73
    %v374 = vunpack.c.l.b16 %v74
    %v375 = vunpack.c.l.b16 %v75
    %v376 = vunpack.c.l.b16 %v76
    %v377 = vunpack.c.l.b16 %v77
    %v378 = vunpack.c.l.b16 %v78
    %v379 = vunpack.c.l.b16 %v79
    %v380 = vunpack.c.l.b16 %v80
    %v381 = vunpack.c.l.b16 %v81
    %v382 = vunpack.c.l.b16 %v82
    %v383 = vunpack.c.l.b16 %v83
    %v384 = vunpack.c.l.b16 %v84
    %v385 = vunpack.c.l.b16 %v85
    %v386 = vunpack.c.l.b16 %v86
    %v387 = vunpack.c.l.b16 %v87
    %v388 = vunpack.c.l.b16 %v88
    %v389 = vunpack.c.l.b16 %v89
    %v390 = vunpack.c.l.b16 %v90
    %v391 = vunpack.c.l.b16 %v91
    %v392 = vunpack.c.l.b16 %v92
    %v393 = vunpack.c.l.b16 %v93
    %v394 = vunpack.c.l.b16 %v94
    %v395 = vunpack.c.l.b16 %v95
    %v396 = vunpack.c.l.b16 %v96
    %v397 = vunpack.c.l.b16 %v97
    %v398 = vunpack.c.l.b16 %v98
    %v399 = vunpack.c.l.b16 %v99
    %v400 = vunpack.c.l.b16 %v100
    %v401 = vunpack.c.l.b16 %v101
    %v402 = vunpack.c.l.b16 %v102
    %v403 = vunpack.c.l.b16 %v103
    %v404 = vunpack.c.l.b16 %v104
    %v405 = vunpack.c.l.b16 %v105
    %v406 = vunpack.c.l.b16 %v106
    %v407 = vunpack.c.l.b16 %v107
    %v408 = vunpack.c.l.b16 %v108
    %v409 = vunpack.c.l.b16 %v109
    %v410 = vunpack.c.l.b16 %v110
    %v411 = vunpack.c.l.b16 %v111
    %v412 = vunpack.c.l.b16 %v112
    %v413 = vunpack.c.l.b16 %v113
    %v414 = vunpack.c.l.b16 %v114
    %v415 = vunpack.c.l.b16 %v115
    %v416 = vunpack.c.l.b16 %v116
    %v417 = vunpack.c.l.b16 %v117
    %v418 = vunpack.c.l.b16 %v118
    %v419 = vunpack.c.l.b16 %v119
    %v420 = vunpack.c.l.b16 %v120
    %v421 = vunpack.c.l.b16 %v121
    %v422 = vunpack.c.l.b16 %v122
    %v423 = vunpack.c.l.b16 %v123
    %v424 = vunpack.c.l.b16 %v124
    %v425 = vunpack.c.l.b16 %v125
    %v426 = vunpack.c.l.b16 %v126
    %v427 = vunpack.c.l.b16 %v127
    %v428 = vunpack.c.l.b16 %v128
    %v429 = vunpack.c.l.b16 %v129
    %v430 = vunpack.c.l.b16 %v130
    %v431 = vunpack.c.l.b16 %v131
    %v432 = vunpack.c.l.b16 %v132
    %v433 = vunpack.c.l.b16 %v133
    %v434 = vunpack.c.l.b16 %v134
    %v435 = vunpack.c.l.b16 %v135
    %v436 = vunpack.c.l.b16 %v136
    %v437 = vunpack.c.l.b16 %v137
    %v438 = vunpack.c.l.b16 %v138
    %v439 = vunpack.c.l.b16 %v139
    %v440 = vunpack.c.l.b16 %v140
    %v441 = vunpack.c.l.b16 %v141
    %v442 = vunpack.c.l.b16 %v142
    %v443 = vunpack.c.l.b16 %v143
    %v444 = vunpack.c.l.b16 %v144
    %v445 = vunpack.c.l.b16 %v145
    %v446 = vunpack.c.l.b16 %v146
    %v447 = vunpack.c.l.b16 %v147
    %v448 = vunpack.c.l.b16 %v148
    %v449 = vunpack.c.l.b16 %v149
    %v450 = vunpack.c.l.b16 %v150
    %v451 = vunpack.c.l.b16 %v151
    %v452 = vunpack.c.l.b16 %v152
    %v453 = vunpack.c.l.b16 %v153
    %v454 = vunpack.c.l.b16 %v154
    %v455 = vunpack.c.l.b16 %v155
    %v456 = vunpack.c.l.b16 %v156
    %v457 = vunpack.c.l.b16 %v157
    %v458 = vunpack.c.l.b16 %v158
    %v459 = vunpack.c.l.b16 %v159
    %v460 = vunpack.c.l.b16 %v160
    %v461 = vunpack.c.l.b16 %v161
    %v462 = vunpack.c.l.b16 %v162
    %v463 = vunpack.c.l.b16 %v163
    %v464 = vunpack.c.l.b16 %v164
    %v465 = vunpack.c.l.b16 %v165
    %v466 = vunpack.c.l.b16 %v166
    %v467 = vunpack.c.l.b16 %v167
    %v468 = vunpack.c.l.b16 %v168
    %v469 = vunpack.c.l.b16 %v169
    %v470 = vunpack.c.l.b16 %v170
    %v471 = vunpack.c.l.b16 %v171
    %v472 = vunpack.c.l.b16 %v172
    %v473 = vunpack.c.l.b16 %v173
    %v474 = vunpack.c.l.b16 %v174
    %v475 = vunpack.c.l.b16 %v175
    %v476 = vunpack.c.l.b16 %v176
    %v477 = vunpack.c.l.b16 %v177
    %v478 = vunpack.c.l.b16 %v178
    %v479 = vunpack.c.l.b16 %v179
    %v480 = vunpack.c.l.b16 %v180
    %v481 = vunpack.c.l.b16 %v181
    %v482 = vunpack.c.l.b16 %v182
    %v483 = vunpack.c.l.b16 %v183
    %v484 = vunpack.c.l.b16 %v184
    %v485 = vunpack.c.l.b16 %v185
    %v486 = vunpack.c.l.b16 %v186
    %v487 = vunpack.c.l.b16 %v187
    %v488 = vunpack.c.l.b16 %v188
    %v489 = vunpack.c.l.b16 %v189
    %v490 = vunpack.c.l.b16 %v190
    %v491 = vunpack.c.l.b16 %v191
    %v492 = vunpack.c.l.b16 %v192
    %v493 = vunpack.c.l.b16 %v193
    %v494 = vunpack.c.l.b16 %v194
    %v495 = vunpack.c.l.b16 %v195
    %v496 = vpack.c.b16 %v369, %v368
    %v497 = vpack.c.b16 %v371, %v370
    %v498 = vpack.c.b16 %v373, %v372
    %v499 = vpack.c.b16 %v375, %v374
    %v500 = vpack.c.b16 %v377, %v376
    %v501 = vpack.c.b16 %v379, %v378
    %v502 = vpack.c.b16 %v381, %v380
    %v503 = vpack.c.b16 %v383, %v382
    %v504 = vpack.c.b16 %v385, %v384
    %v505 = vpack.c.b16 %v387, %v386
    %v506 = vpack.c.b16 %v389, %v388
    %v507 = vpack.c.b16 %v391, %v390
    %v508 = vpack.c.b16 %v393, %v392
    %v509 = vpack.c.b16 %v395, %v394
    %v510 = vpack.c.b16 %v397, %v396
    %v511 = vpack.c.b16 %v399, %v398
    %v512 = vpack.c.b16 %v401, %v400
    %v513 = vpack.c.b16 %v403, %v402
    %v514 = vpack.c.b16 %v405, %v404
    %v515 = vpack.c.b16 %v407, %v406
    %v516 = vpack.c.b16 %v409, %v408
    %v517 = vpack.c.b16 %v411, %v410
    %v518 = vpack.c.b16 %v413, %v412
    %v519 = vpack.c.b16 %v415, %v414
    %v520 = vpack.c.b16 %v417, %v416
    %v521 = vpack.c.b16 %v419, %v418
    %v522 = vpack.c.b16 %v421, %v420
    %v523 = vpack.c.b16 %v423, %v422
    %v524 = vpack.c.b16 %v425, %v424
    %v525 = vpack.c.b16 %v427, %v426
    %v526 = vpack.c.b16 %v429, %v428
    %v527 = vpack.c.b16 %v431, %v430
    %v528 = vpack.c.b16 %v433, %v432
    %v529 = vpack.c.b16 %v435, %v434
    %v530 = vpack.c.b16 %v437, %v436
    %v531 = vpack.c.b16 %v439, %v438
    %v532 = vpack.c.b16 %v441, %v440
    %v533 = vpack.c.b16 %v443, %v442
    %v534 = vpack.c.b16 %v445, %v444
    %v535 = vpack.c.b16 %v447, %v446
    %v536 = vpack.c.b16 %v449, %v448
    %v537 = vpack.c.b16 %v451, %v450
    %v538 = vpack.c.b16 %v453, %v452
    %v539 = vpack.c.b16 %v455, %v454
    %v540 = vpack.c.b16 %v457, %v456
    %v541 = vpack.c.b16 %v459, %v458
    %v542 = vpack.c.b16 %v461, %v460
    %v543 = vpack.c.b16 %v463, %v462
    %v544 = vpack.c.b16 %v465, %v464
    %v545 = vpack.c.b16 %v467, %v466
    %v546 = vpack.c.b16 %v469, %v468
    %v547 = vpack.c.b16 %v471, %v470
    %v548 = vpack.c.b16 %v473, %v472
    %v549 = vpack.c.b16 %v475, %v474
    %v550 = vpack.c.b16 %v477, %v476
    %v551 = vpack.c.b16 %v479, %v478
    %v552 = vpack.c.b16 %v481, %v480
    %v553 = vpack.c.b16 %v483, %v482
    %v554 = vpack.c.b16 %v485, %v484
    %v555 = vpack.c.b16 %v487, %v486
    %v556 = vpack.c.b16 %v489, %v488
    %v557 = vpack.c.b16 %v491, %v490
    %v558 = vpack.c.b16 %v493, %v492
    %v559 = vpack.c.b16 %v495, %v494
    %624 = vmatpush.bf16.msra.mxu0 %v503
    %625 = vmatpush.bf16.msra.mxu0 %v502
    %626 = vmatpush.bf16.msra.mxu0 %v501
    %627 = vmatpush.bf16.msra.mxu0 %v500
    %628 = vmatpush.bf16.msra.mxu0 %v499
    %629 = vmatpush.bf16.msra.mxu0 %v498
    %630 = vmatpush.bf16.msra.mxu0 %v497
    %631 = vmatpush.bf16.msra.mxu0 %v496
    %632 = vmatmul.bf16.gmra.mxu0 %v224
    %v633 = vpop.f32.mrf.mxu0
    %v634 = vadd.f32 %v198, %v633
    %v635 = vpop.f32.mrf.mxu0
    %v636 = vadd.f32 %v198, %v635
    %637 = vdwg.mxu0
    %638 = vmatpush.bf16.msra.mxu0 %v511
    %639 = vmatpush.bf16.msra.mxu0 %v510
    %640 = vmatpush.bf16.msra.mxu0 %v509
    %641 = vmatpush.bf16.msra.mxu0 %v508
    %642 = vmatpush.bf16.msra.mxu0 %v507
    %643 = vmatpush.bf16.msra.mxu0 %v506
    %644 = vmatpush.bf16.msra.mxu0 %v505
    %645 = vmatpush.bf16.msra.mxu0 %v504
    %646 = vmatmul.bf16.gmra.mxu0 %v225
    %v647 = vpop.f32.mrf.mxu0
    %v648 = vadd.f32 %v634, %v647
    %v649 = vpop.f32.mrf.mxu0
    %v650 = vadd.f32 %v636, %v649
    %651 = vdwg.mxu0
    %652 = vmatpush.bf16.msra.mxu0 %v519
    %653 = vmatpush.bf16.msra.mxu0 %v518
    %654 = vmatpush.bf16.msra.mxu0 %v517
    %655 = vmatpush.bf16.msra.mxu0 %v516
    %656 = vmatpush.bf16.msra.mxu0 %v515
    %657 = vmatpush.bf16.msra.mxu0 %v514
    %658 = vmatpush.bf16.msra.mxu0 %v513
    %659 = vmatpush.bf16.msra.mxu0 %v512
    %660 = vmatmul.bf16.gmra.mxu0 %v226
    %v661 = vpop.f32.mrf.mxu0
    %v662 = vadd.f32 %v648, %v661
    %v663 = vpop.f32.mrf.mxu0
    %v664 = vadd.f32 %v650, %v663
    %665 = vdwg.mxu0
    %666 = vmatpush.bf16.msra.mxu0 %v527
    %667 = vmatpush.bf16.msra.mxu0 %v526
    %668 = vmatpush.bf16.msra.mxu0 %v525
    %669 = vmatpush.bf16.msra.mxu0 %v524
    %670 = vmatpush.bf16.msra.mxu0 %v523
    %671 = vmatpush.bf16.msra.mxu0 %v522
    %672 = vmatpush.bf16.msra.mxu0 %v521
    %673 = vmatpush.bf16.msra.mxu0 %v520
    %674 = vmatmul.bf16.gmra.mxu0 %v227
    %v675 = vpop.f32.mrf.mxu0
    %v676 = vadd.f32 %v662, %v675
    %v677 = vpop.f32.mrf.mxu0
    %v678 = vadd.f32 %v664, %v677
    %679 = vdwg.mxu0
    %680 = vmatpush.bf16.msra.mxu0 %v535
    %681 = vmatpush.bf16.msra.mxu0 %v534
    %682 = vmatpush.bf16.msra.mxu0 %v533
    %683 = vmatpush.bf16.msra.mxu0 %v532
    %684 = vmatpush.bf16.msra.mxu0 %v531
    %685 = vmatpush.bf16.msra.mxu0 %v530
    %686 = vmatpush.bf16.msra.mxu0 %v529
    %687 = vmatpush.bf16.msra.mxu0 %v528
    %688 = vmatmul.bf16.gmra.mxu0 %v228
    %v689 = vpop.f32.mrf.mxu0
    %v690 = vadd.f32 %v676, %v689
    %v691 = vpop.f32.mrf.mxu0
    %v692 = vadd.f32 %v678, %v691
    %693 = vdwg.mxu0
    %694 = vmatpush.bf16.msra.mxu0 %v543
    %695 = vmatpush.bf16.msra.mxu0 %v542
    %696 = vmatpush.bf16.msra.mxu0 %v541
    %697 = vmatpush.bf16.msra.mxu0 %v540
    %698 = vmatpush.bf16.msra.mxu0 %v539
    %699 = vmatpush.bf16.msra.mxu0 %v538
    %700 = vmatpush.bf16.msra.mxu0 %v537
    %701 = vmatpush.bf16.msra.mxu0 %v536
    %702 = vmatmul.bf16.gmra.mxu0 %v229
    %v703 = vpop.f32.mrf.mxu0
    %v704 = vadd.f32 %v690, %v703
    %v705 = vpop.f32.mrf.mxu0
    %v706 = vadd.f32 %v692, %v705
    %707 = vdwg.mxu0
    %708 = vmatpush.bf16.msra.mxu0 %v551
    %709 = vmatpush.bf16.msra.mxu0 %v550
    %710 = vmatpush.bf16.msra.mxu0 %v549
    %711 = vmatpush.bf16.msra.mxu0 %v548
    %712 = vmatpush.bf16.msra.mxu0 %v547
    %713 = vmatpush.bf16.msra.mxu0 %v546
    %714 = vmatpush.bf16.msra.mxu0 %v545
    %715 = vmatpush.bf16.msra.mxu0 %v544
    %716 = vmatmul.bf16.gmra.mxu0 %v230
    %v717 = vpop.f32.mrf.mxu0
    %v718 = vadd.f32 %v704, %v717
    %v719 = vpop.f32.mrf.mxu0
    %v720 = vadd.f32 %v706, %v719
    %721 = vdwg.mxu0
    %722 = vmatpush.bf16.msra.mxu0 %v559
    %723 = vmatpush.bf16.msra.mxu0 %v558
    %724 = vmatpush.bf16.msra.mxu0 %v557
    %725 = vmatpush.bf16.msra.mxu0 %v556
    %726 = vmatpush.bf16.msra.mxu0 %v555
    %727 = vmatpush.bf16.msra.mxu0 %v554
    %728 = vmatpush.bf16.msra.mxu0 %v553
    %729 = vmatpush.bf16.msra.mxu0 %v552
    %730 = vmatmul.bf16.gmra.mxu0 %v231
    %v731 = vpop.f32.mrf.mxu0
    %v732 = vadd.f32 %v718, %v731
    %v733 = vpop.f32.mrf.mxu0
    %v734 = vadd.f32 %v720, %v733
    %735 = vdwg.mxu0
    %v736 = vmax.f32 %v732, 0.0
    %v737 = vmax.f32 %v734, 0.0
    %v738 = vpack.c.bf16 %v737, %v736
    %v739 = vld [vmem:[%s3] sm:$0xf]
    %v740 = vld [vmem:[%s3 + $0x4] sm:$0xf]
    %v741 = vld [vmem:[%s3 + $0x8] sm:$0xf]
    %v742 = vld [vmem:[%s3 + $0xc] sm:$0xf]
    %v743 = vld [vmem:[%s3 + $0x10] sm:$0xf]
    %v744 = vld [vmem:[%s3 + $0x14] sm:$0xf]
    %v745 = vld [vmem:[%s3 + $0x18] sm:$0xf]
    %v746 = vld [vmem:[%s3 + $0x1c] sm:$0xf]
    %v747 = vld [vmem:[%s3 + $0x20] sm:$0xf]
    %v748 = vld [vmem:[%s3 + $0x24] sm:$0xf]
    %v749 = vld [vmem:[%s3 + $0x28] sm:$0xf]
    %v750 = vld [vmem:[%s3 + $0x2c] sm:$0xf]
    %v751 = vld [vmem:[%s3 + $0x30] sm:$0xf]
    %v752 = vld [vmem:[%s3 + $0x34] sm:$0xf]
    %v753 = vld [vmem:[%s3 + $0x38] sm:$0xf]
    %v754 = vld [vmem:[%s3 + $0x3c] sm:$0xf]
    %v755 = vld [vmem:[%s4] sm:$0x1]
    %v757 = vperm.slane %v755, 0
    %v775 = vunpack.c.l.b16 %v739
    %v776 = vunpack.c.l.b16 %v740
    %v777 = vunpack.c.l.b16 %v741
    %v778 = vunpack.c.l.b16 %v742
    %v779 = vunpack.c.l.b16 %v743
    %v780 = vunpack.c.l.b16 %v744
    %v781 = vunpack.c.l.b16 %v745
    %v782 = vunpack.c.l.b16 %v746
    %v783 = vunpack.c.l.b16 %v747
    %v784 = vunpack.c.l.b16 %v748
    %v785 = vunpack.c.l.b16 %v749
    %v786 = vunpack.c.l.b16 %v750
    %v787 = vunpack.c.l.b16 %v751
    %v788 = vunpack.c.l.b16 %v752
    %v789 = vunpack.c.l.b16 %v753
    %v790 = vunpack.c.l.b16 %v754
    %v791 = vpack.c.b16 %v776, %v775
    %v792 = vpack.c.b16 %v778, %v777
    %v793 = vpack.c.b16 %v780, %v779
    %v794 = vpack.c.b16 %v782, %v781
    %v795 = vpack.c.b16 %v784, %v783
    %v796 = vpack.c.b16 %v786, %v785
    %v797 = vpack.c.b16 %v788, %v787
    %v798 = vpack.c.b16 %v790, %v789
    %807 = vmatpush.bf16.msra.mxu0 %v798
    %808 = vmatpush.bf16.msra.mxu0 %v797
    %809 = vmatpush.bf16.msra.mxu0 %v796
    %810 = vmatpush.bf16.msra.mxu0 %v795
    %811 = vmatpush.bf16.msra.mxu0 %v794
    %812 = vmatpush.bf16.msra.mxu0 %v793
    %813 = vmatpush.bf16.msra.mxu0 %v792
    %814 = vmatpush.bf16.msra.mxu0 %v791
    %815 = vmatmul.bf16.gmra.mxu0 %v738
    %v816 = vpop.f32.mrf.mxu0
    %v817 = vadd.f32 %v757, %v816
    %v818 = vpop.f32.mrf.mxu0
    %v819 = vadd.f32 %v757, %v818
    %820 = vdwg.mxu0
    %v821 = vmax.f32 %v817, 0.0
    %v822 = vmax.f32 %v819, 0.0
    %v823 = vpack.c.bf16 %v822, %v821
    %v824 = vld [vmem:[%s5] sm:$0xf]
    %v825 = vld [vmem:[%s5 + $0x4] sm:$0xf]
    %v826 = vld [vmem:[%s5 + $0x8] sm:$0xf]
    %v827 = vld [vmem:[%s5 + $0xc] sm:$0xf]
    %v828 = vld [vmem:[%s5 + $0x10] sm:$0xf]
    %v829 = vld [vmem:[%s5 + $0x14] sm:$0xf]
    %v830 = vld [vmem:[%s5 + $0x18] sm:$0xf]
    %v831 = vld [vmem:[%s5 + $0x1c] sm:$0xf]
    %v832 = vld [vmem:[%s5 + $0x20] sm:$0xf]
    %v833 = vld [vmem:[%s5 + $0x24] sm:$0xf]
    %v834 = vld [vmem:[%s5 + $0x28] sm:$0xf]
    %v835 = vld [vmem:[%s5 + $0x2c] sm:$0xf]
    %v836 = vld [vmem:[%s5 + $0x30] sm:$0xf]
    %v837 = vld [vmem:[%s5 + $0x34] sm:$0xf]
    %v838 = vld [vmem:[%s5 + $0x38] sm:$0xf]
    %v839 = vld [vmem:[%s5 + $0x3c] sm:$0xf]
    %v840 = vld [vmem:[%s6] sm:$0x1]
    %v842 = vperm.slane %v840, 0
    %v860 = vunpack.c.l.b16 %v824
    %v861 = vunpack.c.l.b16 %v825
    %v862 = vunpack.c.l.b16 %v826
    %v863 = vunpack.c.l.b16 %v827
    %v864 = vunpack.c.l.b16 %v828
    %v865 = vunpack.c.l.b16 %v829
    %v866 = vunpack.c.l.b16 %v830
    %v867 = vunpack.c.l.b16 %v831
    %v868 = vunpack.c.l.b16 %v832
    %v869 = vunpack.c.l.b16 %v833
    %v870 = vunpack.c.l.b16 %v834
    %v871 = vunpack.c.l.b16 %v835
    %v872 = vunpack.c.l.b16 %v836
    %v873 = vunpack.c.l.b16 %v837
    %v874 = vunpack.c.l.b16 %v838
    %v875 = vunpack.c.l.b16 %v839
    %v876 = vpack.c.b16 %v861, %v860
    %v877 = vpack.c.b16 %v863, %v862
    %v878 = vpack.c.b16 %v865, %v864
    %v879 = vpack.c.b16 %v867, %v866
    %v880 = vpack.c.b16 %v869, %v868
    %v881 = vpack.c.b16 %v871, %v870
    %v882 = vpack.c.b16 %v873, %v872
    %v883 = vpack.c.b16 %v875, %v874
    %892 = vmatpush.bf16.msra.mxu0 %v883
    %893 = vmatpush.bf16.msra.mxu0 %v882
    %894 = vmatpush.bf16.msra.mxu0 %v881
    %895 = vmatpush.bf16.msra.mxu0 %v880
    %896 = vmatpush.bf16.msra.mxu0 %v879
    %897 = vmatpush.bf16.msra.mxu0 %v878
    %898 = vmatpush.bf16.msra.mxu0 %v877
    %899 = vmatpush.bf16.msra.mxu0 %v876
    %900 = vmatmul.bf16.gmra.mxu0 %v823
    %v901 = vpop.f32.mrf.mxu0
    %v902 = vadd.f32 %v842, %v901
    %v903 = vpop.f32.mrf.mxu0
    %v904 = vadd.f32 %v842, %v903
    %905 = vdwg.mxu0
    %v906 = vmax.f32 %v902, 0.0
    %v907 = vmax.f32 %v904, 0.0
    %v908 = vpack.c.bf16 %v907, %v906
    %v909 = vld [vmem:[%s7] sm:$0xf]
    %v910 = vld [vmem:[%s7 + $0x4] sm:$0xf]
    %v911 = vld [vmem:[%s7 + $0x8] sm:$0xf]
    %v912 = vld [vmem:[%s7 + $0xc] sm:$0xf]
    %v913 = vld [vmem:[%s7 + $0x10] sm:$0xf]
    %v914 = vld [vmem:[%s7 + $0x14] sm:$0xf]
    %v915 = vld [vmem:[%s7 + $0x18] sm:$0xf]
    %v916 = vld [vmem:[%s7 + $0x1c] sm:$0xf]
    %v917 = vld [vmem:[%s7 + $0x20] sm:$0xf]
    %v918 = vld [vmem:[%s7 + $0x24] sm:$0xf]
    %v919 = vld [vmem:[%s7 + $0x28] sm:$0xf]
    %v920 = vld [vmem:[%s7 + $0x2c] sm:$0xf]
    %v921 = vld [vmem:[%s7 + $0x30] sm:$0xf]
    %v922 = vld [vmem:[%s7 + $0x34] sm:$0xf]
    %v923 = vld [vmem:[%s7 + $0x38] sm:$0xf]
    %v924 = vld [vmem:[%s7 + $0x3c] sm:$0xf]
    %v925 = vld [vmem:[%s8] sm:$0x1]
    %v927 = vperm.slane %v925, 0
    %v945 = vunpack.c.l.b16 %v909
    %v946 = vunpack.c.l.b16 %v910
    %v947 = vunpack.c.l.b16 %v911
    %v948 = vunpack.c.l.b16 %v912
    %v949 = vunpack.c.l.b16 %v913
    %v950 = vunpack.c.l.b16 %v914
    %v951 = vunpack.c.l.b16 %v915
    %v952 = vunpack.c.l.b16 %v916
    %v953 = vunpack.c.l.b16 %v917
    %v954 = vunpack.c.l.b16 %v918
    %v955 = vunpack.c.l.b16 %v919
    %v956 = vunpack.c.l.b16 %v920
    %v957 = vunpack.c.l.b16 %v921
    %v958 = vunpack.c.l.b16 %v922
    %v959 = vunpack.c.l.b16 %v923
    %v960 = vunpack.c.l.b16 %v924
    %v961 = vpack.c.b16 %v946, %v945
    %v962 = vpack.c.b16 %v948, %v947
    %v963 = vpack.c.b16 %v950, %v949
    %v964 = vpack.c.b16 %v952, %v951
    %v965 = vpack.c.b16 %v954, %v953
    %v966 = vpack.c.b16 %v956, %v955
    %v967 = vpack.c.b16 %v958, %v957
    %v968 = vpack.c.b16 %v960, %v959
    %977 = vmatpush.bf16.msra.mxu0 %v968
    %978 = vmatpush.bf16.msra.mxu0 %v967
    %979 = vmatpush.bf16.msra.mxu0 %v966
    %980 = vmatpush.bf16.msra.mxu0 %v965
    %981 = vmatpush.bf16.msra.mxu0 %v964
    %982 = vmatpush.bf16.msra.mxu0 %v963
    %983 = vmatpush.bf16.msra.mxu0 %v962
    %984 = vmatpush.bf16.msra.mxu0 %v961
    %985 = vmatmul.bf16.gmra.mxu0 %v908
    %v986 = vpop.f32.mrf.mxu0
    %v987 = vadd.f32 %v927, %v986
    %v988 = vpop.f32.mrf.mxu0
    %v989 = vadd.f32 %v927, %v988
    %990 = vdwg.mxu0
    %v991 = vmax.f32 %v987, 0.0
    %v992 = vmax.f32 %v989, 0.0
    %v993 = vpack.c.bf16 %v992, %v991
    %v994 = vld [vmem:[%s9] sm:$0xf]
    %v995 = vld [vmem:[%s9 + $0x4] sm:$0xf]
    %v996 = vld [vmem:[%s9 + $0x8] sm:$0xf]
    %v997 = vld [vmem:[%s9 + $0xc] sm:$0xf]
    %v998 = vld [vmem:[%s9 + $0x10] sm:$0xf]
    %v999 = vld [vmem:[%s9 + $0x14] sm:$0xf]
    %v1000 = vld [vmem:[%s9 + $0x18] sm:$0xf]
    %v1001 = vld [vmem:[%s9 + $0x1c] sm:$0xf]
    %v1002 = vld [vmem:[%s9 + $0x20] sm:$0xf]
    %v1003 = vld [vmem:[%s9 + $0x24] sm:$0xf]
    %v1004 = vld [vmem:[%s9 + $0x28] sm:$0xf]
    %v1005 = vld [vmem:[%s9 + $0x2c] sm:$0xf]
    %v1006 = vld [vmem:[%s9 + $0x30] sm:$0xf]
    %v1007 = vld [vmem:[%s9 + $0x34] sm:$0xf]
    %v1008 = vld [vmem:[%s9 + $0x38] sm:$0xf]
    %v1009 = vld [vmem:[%s9 + $0x3c] sm:$0xf]
    %v1010 = vld [vmem:[%s10] sm:$0x1]
    %v1012 = vperm.slane %v1010, 0
    %v1030 = vunpack.c.l.b16 %v994
    %v1031 = vunpack.c.l.b16 %v995
    %v1032 = vunpack.c.l.b16 %v996
    %v1033 = vunpack.c.l.b16 %v997
    %v1034 = vunpack.c.l.b16 %v998
    %v1035 = vunpack.c.l.b16 %v999
    %v1036 = vunpack.c.l.b16 %v1000
    %v1037 = vunpack.c.l.b16 %v1001
    %v1038 = vunpack.c.l.b16 %v1002
    %v1039 = vunpack.c.l.b16 %v1003
    %v1040 = vunpack.c.l.b16 %v1004
    %v1041 = vunpack.c.l.b16 %v1005
    %v1042 = vunpack.c.l.b16 %v1006
    %v1043 = vunpack.c.l.b16 %v1007
    %v1044 = vunpack.c.l.b16 %v1008
    %v1045 = vunpack.c.l.b16 %v1009
    %v1046 = vpack.c.b16 %v1031, %v1030
    %v1047 = vpack.c.b16 %v1033, %v1032
    %v1048 = vpack.c.b16 %v1035, %v1034
    %v1049 = vpack.c.b16 %v1037, %v1036
    %v1050 = vpack.c.b16 %v1039, %v1038
    %v1051 = vpack.c.b16 %v1041, %v1040
    %v1052 = vpack.c.b16 %v1043, %v1042
    %v1053 = vpack.c.b16 %v1045, %v1044
    %1062 = vmatpush.bf16.msra.mxu0 %v1053
    %1063 = vmatpush.bf16.msra.mxu0 %v1052
    %1064 = vmatpush.bf16.msra.mxu0 %v1051
    %1065 = vmatpush.bf16.msra.mxu0 %v1050
    %1066 = vmatpush.bf16.msra.mxu0 %v1049
    %1067 = vmatpush.bf16.msra.mxu0 %v1048
    %1068 = vmatpush.bf16.msra.mxu0 %v1047
    %1069 = vmatpush.bf16.msra.mxu0 %v1046
    %1070 = vmatmul.bf16.gmra.mxu0 %v993
    %v1071 = vpop.f32.mrf.mxu0
    %v1072 = vadd.f32 %v1012, %v1071
    %v1073 = vpop.f32.mrf.mxu0
    %v1074 = vadd.f32 %v1012, %v1073
    %1075 = vdwg.mxu0
    %v1076 = vmax.f32 %v1072, 0.0
    %v1077 = vmax.f32 %v1074, 0.0
    %v1078 = vpack.c.bf16 %v1077, %v1076
    %v1079 = vld [vmem:[%s11] sm:$0xf]
    %v1080 = vld [vmem:[%s11 + $0x4] sm:$0xf]
    %v1081 = vld [vmem:[%s11 + $0x8] sm:$0xf]
    %v1082 = vld [vmem:[%s11 + $0xc] sm:$0xf]
    %v1083 = vld [vmem:[%s11 + $0x10] sm:$0xf]
    %v1084 = vld [vmem:[%s11 + $0x14] sm:$0xf]
    %v1085 = vld [vmem:[%s11 + $0x18] sm:$0xf]
    %v1086 = vld [vmem:[%s11 + $0x1c] sm:$0xf]
    %v1087 = vld [vmem:[%s11 + $0x20] sm:$0xf]
    %v1088 = vld [vmem:[%s11 + $0x24] sm:$0xf]
    %v1089 = vld [vmem:[%s11 + $0x28] sm:$0xf]
    %v1090 = vld [vmem:[%s11 + $0x2c] sm:$0xf]
    %v1091 = vld [vmem:[%s11 + $0x30] sm:$0xf]
    %v1092 = vld [vmem:[%s11 + $0x34] sm:$0xf]
    %v1093 = vld [vmem:[%s11 + $0x38] sm:$0xf]
    %v1094 = vld [vmem:[%s11 + $0x3c] sm:$0xf]
    %v1095 = vld [vmem:[%s12] sm:$0x1]
    %v1097 = vperm.slane %v1095, 0
    %v1115 = vunpack.c.l.b16 %v1079
    %v1116 = vunpack.c.l.b16 %v1080
    %v1117 = vunpack.c.l.b16 %v1081
    %v1118 = vunpack.c.l.b16 %v1082
    %v1119 = vunpack.c.l.b16 %v1083
    %v1120 = vunpack.c.l.b16 %v1084
    %v1121 = vunpack.c.l.b16 %v1085
    %v1122 = vunpack.c.l.b16 %v1086
    %v1123 = vunpack.c.l.b16 %v1087
    %v1124 = vunpack.c.l.b16 %v1088
    %v1125 = vunpack.c.l.b16 %v1089
    %v1126 = vunpack.c.l.b16 %v1090
    %v1127 = vunpack.c.l.b16 %v1091
    %v1128 = vunpack.c.l.b16 %v1092
    %v1129 = vunpack.c.l.b16 %v1093
    %v1130 = vunpack.c.l.b16 %v1094
    %v1131 = vpack.c.b16 %v1116, %v1115
    %v1132 = vpack.c.b16 %v1118, %v1117
    %v1133 = vpack.c.b16 %v1120, %v1119
    %v1134 = vpack.c.b16 %v1122, %v1121
    %v1135 = vpack.c.b16 %v1124, %v1123
    %v1136 = vpack.c.b16 %v1126, %v1125
    %v1137 = vpack.c.b16 %v1128, %v1127
    %v1138 = vpack.c.b16 %v1130, %v1129
    %1147 = vmatpush.bf16.msra.mxu0 %v1138
    %1148 = vmatpush.bf16.msra.mxu0 %v1137
    %1149 = vmatpush.bf16.msra.mxu0 %v1136
    %1150 = vmatpush.bf16.msra.mxu0 %v1135
    %1151 = vmatpush.bf16.msra.mxu0 %v1134
    %1152 = vmatpush.bf16.msra.mxu0 %v1133
    %1153 = vmatpush.bf16.msra.mxu0 %v1132
    %1154 = vmatpush.bf16.msra.mxu0 %v1131
    %1155 = vmatmul.bf16.gmra.mxu0 %v1078
    %v1156 = vpop.f32.mrf.mxu0
    %v1157 = vadd.f32 %v1097, %v1156
    %v1158 = vpop.f32.mrf.mxu0
    %v1159 = vadd.f32 %v1097, %v1158
    %1160 = vdwg.mxu0
    %1161 = vst [vmem:[%s13] sm:$0xff] %v1157
    %1162 = vst [vmem:[%s13 + $0x8] sm:$0xff] %v1159
    // Predicated region
    $region58: #{fully_connected_net_powerful.1} parent=1 // pred_check
      _
    $region59: #{fully_connected_net_powerful.1} parent=1 // pred_check_branch
      %1164 = sbr.rel (0) target = $region61
    $region60: #{fully_connected_net_powerful.1} parent=1 // pred_region
      _
    $region61: #{fully_connected_net_powerful.1} parent=1 // pred_fallthru
      _
    // Predicated region
    $region62: #{fully_connected_net_powerful.1} parent=1 // pred_check
      _
    $region63: #{fully_connected_net_powerful.1} parent=1 // pred_check_branch
      %1166 = sbr.rel (0) target = $region65
    $region64: #{fully_connected_net_powerful.1} parent=1 // pred_region
      _
    $region65: #{fully_connected_net_powerful.1} parent=1 // pred_fallthru
      _
    %1167 = vsyncpa [#allocation3], 1

</llo_original>
